<compile_context>
chip_gen: v6e
topology: v6e:2x2x1
jax: 0.10.0
libtpu: 0.0.40
codegen_flags: <defaults>
</compile_context>

<pallas_src>
import functools
import math

import jax
import jax.numpy as jnp
from jax.experimental import pallas as pl
from jax.experimental.pallas import tpu as pltpu


def _round_up(x, m):
    return (x + m - 1) // m * m


def _cdiv(a, b):
    return (a + b - 1) // b


# --------------------------------- kernel -----------------------------------

def _deers_kernel(drug_ref, mut_ref, cell_ref,
                  aw1d_ref, aw1m_ref, ab1_ref,
                  aw2_ref, ab2_ref,
                  aw3_ref, ab3_ref,
                  aw4_ref, ab4_ref,
                  fw1c_ref, fw1x_ref, fb1_ref,
                  fw2_ref, fb2_ref,
                  fw3t_ref, fb3_ref,
                  out_ref, *, pred_dim, recon_off, recon_w):
    """Fused forward: block-diagonal autoencoders + forward network, one row tile."""
    f32 = jnp.float32

    def mm(x, w_ref):
        # Cast the activation to the weight storage dtype so that a bf16
        # parameter set keeps every matmul on the bf16 MXU path; always
        # accumulate in f32.
        return jnp.dot(x.astype(w_ref.dtype), w_ref[...],
                       preferred_element_type=f32)

    def lin(x, w_ref, b_ref):
        return mm(x, w_ref) + b_ref[...].astype(f32)

    def relu(v):
        return jnp.maximum(v, 0.0)

    # ---- fused drug + mut autoencoders (block-diagonal weights) ----
    # Layer 1: [drug|mut] @ blockdiag(Wd1, Wm1) == drug @ Wd1_ext + mut @ Wm1_ext
    h = relu(mm(drug_ref[...], aw1d_ref) + mm(mut_ref[...], aw1m_ref)
             + ab1_ref[...].astype(f32))
    code = relu(lin(h, aw2_ref, ab2_ref))            # [drug_code | mut_code]
    h = relu(lin(code, aw3_ref, ab3_ref))
    recon = jax.nn.sigmoid(lin(h, aw4_ref, ab4_ref))  # [drug_recon | mut_recon]

    # ---- forward network on cat(drug_code, mut_code, cell) ----
    # Block-matmul identity: cat(code, cell) @ W1 == code @ W1[:cc] + cell @ W1[cc:]
    h = relu(mm(code, fw1c_ref) + mm(cell_ref[...], fw1x_ref)
             + fb1_ref[...].astype(f32))
    h = relu(lin(h, fw2_ref, fb2_ref))
    # Final (F2 -> 1) layer as VPU multiply + lane reduction: an N=1 MXU matmul
    # would waste a full push/drain sequence for one output lane.
    pred = (jnp.sum(h * fw3t_ref[...].astype(f32), axis=-1, keepdims=True)
            + fb3_ref[...].astype(f32))

    # ---- packed, lane-dense output slab: direct (aligned) stores ----
    #   [ pred | pad->128 | drug_recon | mut_recon | pad->slab_w ]
    out_ref[:, 0:pred_dim] = pred.astype(out_ref.dtype)
    out_ref[:, recon_off:recon_off + recon_w] = recon.astype(out_ref.dtype)


# ------------------------------ parameter prep ------------------------------

def _prep_params(drug_params, mut_params, fwd_params, store_dtype):
    """Build fused (block-diagonal) autoencoder weights + split/transpose FN weights."""
    (dw1, db1), (dw2, db2), (dw3, db3), (dw4, db4) = drug_params
    (mw1, mb1), (mw2, mb2), (mw3, mb3), (mw4, mb4) = mut_params
    (fw1, fb1), (fw2, fb2), (fw3, fb3) = fwd_params

    dd, hd = dw1.shape
    dm, hm = mw1.shape
    cd, cm = dw2.shape[1], mw2.shape[1]

    def blockdiag(a, b):
        top = jnp.concatenate([a, jnp.zeros((a.shape[0], b.shape[1]), a.dtype)], axis=1)
        bot = jnp.concatenate([jnp.zeros((b.shape[0], a.shape[1]), b.dtype), b], axis=1)
        return jnp.concatenate([top, bot], axis=0)

    # Layer 1 keeps drug/mut as separate operands: zero-extend each weight over
    # the fused hidden axis (avoids an HBM concat of the two input matrices).
    aw1d = jnp.concatenate([dw1, jnp.zeros((dd, hm), dw1.dtype)], axis=1)
    aw1m = jnp.concatenate([jnp.zeros((dm, hd), mw1.dtype), mw1], axis=1)
    ab1 = jnp.concatenate([db1, mb1], axis=1)
    aw2, ab2 = blockdiag(dw2, mw2), jnp.concatenate([db2, mb2], axis=1)
    aw3, ab3 = blockdiag(dw3, mw3), jnp.concatenate([db3, mb3], axis=1)
    aw4, ab4 = blockdiag(dw4, mw4), jnp.concatenate([db4, mb4], axis=1)

    cc = cd + cm
    fw1_code, fw1_cell = fw1[:cc, :], fw1[cc:, :]
    fw3_t = fw3.T                                    # (1, F2) for the VPU epilogue

    params = [aw1d, aw1m, ab1, aw2, ab2, aw3, ab3, aw4, ab4,
              fw1_code, fw1_cell, fb1, fw2, fb2, fw3_t, fb3]
    if store_dtype is not None:
        params = [p.astype(store_dtype) for p in params]
    return params


# ---------------------------------- wrapper ----------------------------------

def deers_concat_forward(drug, mut, cell, drug_params, mut_params, fwd_params,
                         *, tile_rows=1024, use_bf16=False):
    """DEERS_Concat forward. Returns (prediction, drug_recon, mut_recon).

    use_bf16=True stores inputs / weights in bf16 (f32 accumulation); it is a
    valid speedup on v5e, v6e and v7x (MXU takes bf16 with f32 accumulate on
    all of them), at a small accuracy cost on the reconstructions.
    """
    B, Dd = drug.shape
    _, Dm = mut.shape
    _, Dc = cell.shape
    pred_dim = fwd_params[-1][0].shape[1]
    out_dtype = drug.dtype

    store_dtype = jnp.bfloat16 if use_bf16 else None
    params = _prep_params(drug_params, mut_params, fwd_params, store_dtype)
    (aw1d, aw1m, ab1, aw2, ab2, aw3, ab3, aw4, ab4,
     fw1c, fw1x, fb1, fw2, fb2, fw3t, fb3) = params
    if use_bf16:
        drug = drug.astype(jnp.bfloat16)
        mut = mut.astype(jnp.bfloat16)
        cell = cell.astype(jnp.bfloat16)

    # Packed output slab layout (lane-dense, sections 128-lane aligned).
    recon_w = Dd + Dm
    recon_off = _round_up(max(pred_dim, 1), 128)
    slab_w = recon_off + _round_up(recon_w, 128)

    # Batch tiling: no wrapper padding — grid = cdiv(B, TB), ragged last tile
    # handled by Pallas (rows are independent; tail rows are sliced off).
    # Target at least 2 grid steps so both v7x TensorCores get work.
    TB = max(8, min(_round_up(tile_rows, 8), _round_up(_cdiv(B, 2), 8)))

    # VMEM working-set estimate: double-buffered row tiles, resident
    # (double-buffered) params, f32 intermediates (+ headroom factor 2).
    h_sum = aw1d.shape[1]
    cc = aw2.shape[1]
    f1 = fw1c.shape[1]
    f2 = fw2.shape[1]
    param_bytes = sum(int(p.size) * p.dtype.itemsize for p in params)
    in_row_bytes = (Dd + Dm + Dc) * drug.dtype.itemsize
    out_row_bytes = slab_w * jnp.dtype(out_dtype).itemsize
    interm_row_bytes = 4 * (2 * h_sum + cc + recon_w + f1 + f2 + 1 + slab_w)

    def vmem_est(tb):
        return (2 * tb * (in_row_bytes + out_row_bytes)
                + 2 * param_bytes
                + 2 * tb * interm_row_bytes)

    vmem_budget = 40 << 20     # safe inside v7x's 64 MiB per-core VMEM
    while TB > 8 and vmem_est(TB) > vmem_budget:
        TB = max(8, _round_up(TB // 2, 8))
    grid = (pl.cdiv(B, TB),)
    vmem_limit = int(min(48 << 20, max(8 << 20, vmem_est(TB) + (4 << 20))))

    row_spec = lambda width: pl.BlockSpec((TB, width), lambda i: (i, 0))
    const_spec = lambda a: pl.BlockSpec(a.shape, lambda i: (0, 0))
    in_specs = ([row_spec(Dd), row_spec(Dm), row_spec(Dc)]
                + [const_spec(p) for p in params])
    out_specs = pl.BlockSpec((TB, slab_w), lambda i: (i, 0))

    # Advisory cost estimate for XLA scheduling around the custom call.
    weights = [aw1d, aw1m, aw2, aw3, aw4, fw1c, fw1x, fw2, fw3t]
    flops = 2 * B * sum(int(w.size) for w in weights)
    transcendentals = B * recon_w      # sigmoids on the fused reconstruction
    bytes_accessed = B * (in_row_bytes + out_row_bytes) + param_bytes
    cost = pl.CostEstimate(flops=int(flops),
                           transcendentals=int(transcendentals),
                           bytes_accessed=int(bytes_accessed))

    kernel = functools.partial(_deers_kernel, pred_dim=pred_dim,
                               recon_off=recon_off, recon_w=recon_w)

    slab = pl.pallas_call(
        kernel,
        out_shape=jax.ShapeDtypeStruct((B, slab_w), out_dtype),
        grid=grid,
        in_specs=in_specs,
        out_specs=out_specs,
        compiler_params=pltpu.CompilerParams(
            dimension_semantics=("parallel",),   # megacore sharding (v7x)
            vmem_limit_bytes=vmem_limit),
        cost_estimate=cost,
    )(drug, mut, cell, *params)

    # Note: the three slices below are plain XLA copies of the packed slab; a
    # loss that can consume the slab directly avoids this extra HBM traffic.
    pred = slab[:, :pred_dim]
    drug_recon = slab[:, recon_off:recon_off + Dd]
    mut_recon = slab[:, recon_off + Dd:recon_off + Dd + Dm]
    return pred, drug_recon, mut_recon


# ------------------------------ parameter init -------------------------------

def _init_linear(key, fan_in, fan_out, dtype):
    kw, kb = jax.random.split(key)
    bound = 1.0 / math.sqrt(fan_in)
    w = jax.random.uniform(kw, (fan_in, fan_out), dtype, -bound, bound)
    b = jax.random.uniform(kb, (1, fan_out), dtype, -bound, bound)
    return w, b


def init_autoencoder_params(key, input_dim, hidden_dim, code_dim, dtype=jnp.float32):
    dims = [(input_dim, hidden_dim), (hidden_dim, code_dim),
            (code_dim, hidden_dim), (hidden_dim, input_dim)]
    keys = jax.random.split(key, len(dims))
    return [_init_linear(k, fi, fo, dtype) for k, (fi, fo) in zip(keys, dims)]


def init_forward_network_params(key, in_dim, hidden_dims, out_dim, dtype=jnp.float32):
    sizes = [in_dim] + list(hidden_dims) + [out_dim]
    dims = list(zip(sizes[:-1], sizes[1:]))
    keys = jax.random.split(key, len(dims))
    return [_init_linear(k, fi, fo, dtype) for k, (fi, fo) in zip(keys, dims)]


# --------------------------------- reference ---------------------------------

def reference_forward(drug, mut, cell, drug_params, mut_params, fwd_params):
    def ae(h, params):
        (w1, b1), (w2, b2), (w3, b3), (w4, b4) = params
        h = jnp.maximum(h @ w1 + b1, 0.0)
        code = jnp.maximum(h @ w2 + b2, 0.0)
        h = jnp.maximum(code @ w3 + b3, 0.0)
        recon = jax.nn.sigmoid(h @ w4 + b4)
        return code, recon

    d_code, d_recon = ae(drug, drug_params)
    m_code, m_recon = ae(mut, mut_params)
    x = jnp.concatenate([d_code, m_code, cell], axis=1)
    (w1, b1), (w2, b2), (w3, b3) = fwd_params
    h = jnp.maximum(x @ w1 + b1, 0.0)
    h = jnp.maximum(h @ w2 + b2, 0.0)
    pred = h @ w3 + b3
    return pred, d_recon, m_recon


if __name__ == "__main__":
    batch = 8
    drug_dim, drug_hidden, drug_code = 64, 32, 16
    mut_dim, mut_hidden, mut_code = 48, 32, 16
    cell_dim = 32
    fwd_hidden = [32, 16]
    pred_dim = 1

    key = jax.random.PRNGKey(0)
    kd, km, kc, kpd, kpm, kpf = jax.random.split(key, 6)
    drug = jax.random.uniform(kd, (batch, drug_dim), jnp.float32)
    mut = jax.random.uniform(km, (batch, mut_dim), jnp.float32)
    cell = jax.random.uniform(kc, (batch, cell_dim), jnp.float32)

    drug_params = init_autoencoder_params(kpd, drug_dim, drug_hidden, drug_code)
    mut_params = init_autoencoder_params(kpm, mut_dim, mut_hidden, mut_code)
    fwd_in = drug_code + mut_code + cell_dim
    fwd_params = init_forward_network_params(kpf, fwd_in, fwd_hidden, pred_dim)

    fwd = jax.jit(deers_concat_forward)
    pred, drug_recon, mut_recon = fwd(drug, mut, cell,
                                      drug_params, mut_params, fwd_params)
    jax.block_until_ready((pred, drug_recon, mut_recon))

    ref_pred, ref_dr, ref_mr = reference_forward(drug, mut, cell,
                                                 drug_params, mut_params, fwd_params)
    assert pred.shape == (batch, pred_dim)
    assert drug_recon.shape == (batch, drug_dim)
    assert mut_recon.shape == (batch, mut_dim)
    assert jnp.allclose(pred, ref_pred, atol=1e-4, rtol=1e-4)
    assert jnp.allclose(drug_recon, ref_dr, atol=1e-4, rtol=1e-4)
    assert jnp.allclose(mut_recon, ref_mr, atol=1e-4, rtol=1e-4)

    print("KERNEL_OK")
</pallas_src>

<mosaic_0001>
module attributes {stable_mosaic.version = 11 : i64} {
  func.func @_deers_kernel(%arg0: i32, %arg1: memref<8x64xf32, #tpu.memory_space<vmem>>, %arg2: memref<8x48xf32, #tpu.memory_space<vmem>>, %arg3: memref<8x32xf32, #tpu.memory_space<vmem>>, %arg4: memref<64x64xf32, #tpu.memory_space<vmem>>, %arg5: memref<48x64xf32, #tpu.memory_space<vmem>>, %arg6: memref<1x64xf32, #tpu.memory_space<vmem>>, %arg7: memref<64x32xf32, #tpu.memory_space<vmem>>, %arg8: memref<1x32xf32, #tpu.memory_space<vmem>>, %arg9: memref<32x64xf32, #tpu.memory_space<vmem>>, %arg10: memref<1x64xf32, #tpu.memory_space<vmem>>, %arg11: memref<64x112xf32, #tpu.memory_space<vmem>>, %arg12: memref<1x112xf32, #tpu.memory_space<vmem>>, %arg13: memref<32x32xf32, #tpu.memory_space<vmem>>, %arg14: memref<32x32xf32, #tpu.memory_space<vmem>>, %arg15: memref<1x32xf32, #tpu.memory_space<vmem>>, %arg16: memref<32x16xf32, #tpu.memory_space<vmem>>, %arg17: memref<1x16xf32, #tpu.memory_space<vmem>>, %arg18: memref<1x16xf32, #tpu.memory_space<vmem>>, %arg19: memref<1x1xf32, #tpu.memory_space<vmem>>, %arg20: memref<8x256xf32, #tpu.memory_space<vmem>>) attributes {dimension_semantics = [#tpu.dimension_semantics<parallel>], iteration_bounds = array<i64: 1>, scalar_prefetch = 0 : i64, scratch_operands = 0 : i64, tpu.core_type = #tpu.core_type<tc>, window_params = [{transform_indices = @transform_0, window_bounds = array<i64: 8, 64>}, {transform_indices = @transform_1, window_bounds = array<i64: 8, 48>}, {transform_indices = @transform_2, window_bounds = array<i64: 8, 32>}, {pipeline_mode = #tpu.pipeline_mode<synchronous>, transform_indices = @transform_3, window_bounds = array<i64: 64, 64>}, {pipeline_mode = #tpu.pipeline_mode<synchronous>, transform_indices = @transform_4, window_bounds = array<i64: 48, 64>}, {pipeline_mode = #tpu.pipeline_mode<synchronous>, transform_indices = @transform_5, window_bounds = array<i64: 1, 64>}, {pipeline_mode = #tpu.pipeline_mode<synchronous>, transform_indices = @transform_6, window_bounds = array<i64: 64, 32>}, {pipeline_mode = #tpu.pipeline_mode<synchronous>, transform_indices = @transform_7, window_bounds = array<i64: 1, 32>}, {pipeline_mode = #tpu.pipeline_mode<synchronous>, transform_indices = @transform_8, window_bounds = array<i64: 32, 64>}, {pipeline_mode = #tpu.pipeline_mode<synchronous>, transform_indices = @transform_9, window_bounds = array<i64: 1, 64>}, {pipeline_mode = #tpu.pipeline_mode<synchronous>, transform_indices = @transform_10, window_bounds = array<i64: 64, 112>}, {pipeline_mode = #tpu.pipeline_mode<synchronous>, transform_indices = @transform_11, window_bounds = array<i64: 1, 112>}, {pipeline_mode = #tpu.pipeline_mode<synchronous>, transform_indices = @transform_12, window_bounds = array<i64: 32, 32>}, {pipeline_mode = #tpu.pipeline_mode<synchronous>, transform_indices = @transform_13, window_bounds = array<i64: 32, 32>}, {pipeline_mode = #tpu.pipeline_mode<synchronous>, transform_indices = @transform_14, window_bounds = array<i64: 1, 32>}, {pipeline_mode = #tpu.pipeline_mode<synchronous>, transform_indices = @transform_15, window_bounds = array<i64: 32, 16>}, {pipeline_mode = #tpu.pipeline_mode<synchronous>, transform_indices = @transform_16, window_bounds = array<i64: 1, 16>}, {pipeline_mode = #tpu.pipeline_mode<synchronous>, transform_indices = @transform_17, window_bounds = array<i64: 1, 16>}, {pipeline_mode = #tpu.pipeline_mode<synchronous>, transform_indices = @transform_18, window_bounds = array<i64: 1, 1>}, {transform_indices = @transform_19, window_bounds = array<i64: 8, 256>}]} {
    %c0 = arith.constant 0 : index
    %c0_0 = arith.constant 0 : index
    %0 = vector.load %arg1[%c0, %c0_0] : memref<8x64xf32, #tpu.memory_space<vmem>>, vector<8x64xf32>
    %c0_1 = arith.constant 0 : index
    %c0_2 = arith.constant 0 : index
    %1 = vector.load %arg4[%c0_1, %c0_2] : memref<64x64xf32, #tpu.memory_space<vmem>>, vector<64x64xf32>
    %cst = arith.constant dense<0.000000e+00> : vector<8x64xf32>
    %2 = tpu.matmul %0, %1, %cst {dimension_numbers = #tpu.dot_dimension_numbers<[1], [0], [0], [1], [0, 0, 1, 1], [], []>} : vector<8x64xf32>, vector<64x64xf32>, vector<8x64xf32> -> vector<8x64xf32>
    %c0_3 = arith.constant 0 : index
    %c0_4 = arith.constant 0 : index
    %3 = vector.load %arg2[%c0_3, %c0_4] : memref<8x48xf32, #tpu.memory_space<vmem>>, vector<8x48xf32>
    %c0_5 = arith.constant 0 : index
    %c0_6 = arith.constant 0 : index
    %4 = vector.load %arg5[%c0_5, %c0_6] : memref<48x64xf32, #tpu.memory_space<vmem>>, vector<48x64xf32>
    %cst_7 = arith.constant dense<0.000000e+00> : vector<8x64xf32>
    %5 = tpu.matmul %3, %4, %cst_7 {dimension_numbers = #tpu.dot_dimension_numbers<[1], [0], [0], [1], [0, 0, 1, 1], [], []>} : vector<8x48xf32>, vector<48x64xf32>, vector<8x64xf32> -> vector<8x64xf32>
    %6 = arith.addf %2, %5 : vector<8x64xf32>
    %c0_8 = arith.constant 0 : index
    %c0_9 = arith.constant 0 : index
    %7 = vector.load %arg6[%c0_8, %c0_9] : memref<1x64xf32, #tpu.memory_space<vmem>>, vector<1x64xf32>
    %8 = vector.broadcast %7 : vector<1x64xf32> to vector<8x64xf32>
    %9 = arith.addf %6, %8 : vector<8x64xf32>
    %cst_10 = arith.constant 0.000000e+00 : f32
    %10 = vector.broadcast %cst_10 : f32 to vector<8x64xf32>
    %11 = arith.maximumf %9, %10 : vector<8x64xf32>
    %c0_11 = arith.constant 0 : index
    %c0_12 = arith.constant 0 : index
    %12 = vector.load %arg7[%c0_11, %c0_12] : memref<64x32xf32, #tpu.memory_space<vmem>>, vector<64x32xf32>
    %cst_13 = arith.constant dense<0.000000e+00> : vector<8x32xf32>
    %13 = tpu.matmul %11, %12, %cst_13 {dimension_numbers = #tpu.dot_dimension_numbers<[1], [0], [0], [1], [0, 0, 1, 1], [], []>} : vector<8x64xf32>, vector<64x32xf32>, vector<8x32xf32> -> vector<8x32xf32>
    %c0_14 = arith.constant 0 : index
    %c0_15 = arith.constant 0 : index
    %14 = vector.load %arg8[%c0_14, %c0_15] : memref<1x32xf32, #tpu.memory_space<vmem>>, vector<1x32xf32>
    %15 = vector.broadcast %14 : vector<1x32xf32> to vector<8x32xf32>
    %16 = arith.addf %13, %15 : vector<8x32xf32>
    %cst_16 = arith.constant 0.000000e+00 : f32
    %17 = vector.broadcast %cst_16 : f32 to vector<8x32xf32>
    %18 = arith.maximumf %16, %17 : vector<8x32xf32>
    %c0_17 = arith.constant 0 : index
    %c0_18 = arith.constant 0 : index
    %19 = vector.load %arg9[%c0_17, %c0_18] : memref<32x64xf32, #tpu.memory_space<vmem>>, vector<32x64xf32>
    %cst_19 = arith.constant dense<0.000000e+00> : vector<8x64xf32>
    %20 = tpu.matmul %18, %19, %cst_19 {dimension_numbers = #tpu.dot_dimension_numbers<[1], [0], [0], [1], [0, 0, 1, 1], [], []>} : vector<8x32xf32>, vector<32x64xf32>, vector<8x64xf32> -> vector<8x64xf32>
    %c0_20 = arith.constant 0 : index
    %c0_21 = arith.constant 0 : index
    %21 = vector.load %arg10[%c0_20, %c0_21] : memref<1x64xf32, #tpu.memory_space<vmem>>, vector<1x64xf32>
    %22 = vector.broadcast %21 : vector<1x64xf32> to vector<8x64xf32>
    %23 = arith.addf %20, %22 : vector<8x64xf32>
    %cst_22 = arith.constant 0.000000e+00 : f32
    %24 = vector.broadcast %cst_22 : f32 to vector<8x64xf32>
    %25 = arith.maximumf %23, %24 : vector<8x64xf32>
    %c0_23 = arith.constant 0 : index
    %c0_24 = arith.constant 0 : index
    %26 = vector.load %arg11[%c0_23, %c0_24] : memref<64x112xf32, #tpu.memory_space<vmem>>, vector<64x112xf32>
    %cst_25 = arith.constant dense<0.000000e+00> : vector<8x112xf32>
    %27 = tpu.matmul %25, %26, %cst_25 {dimension_numbers = #tpu.dot_dimension_numbers<[1], [0], [0], [1], [0, 0, 1, 1], [], []>} : vector<8x64xf32>, vector<64x112xf32>, vector<8x112xf32> -> vector<8x112xf32>
    %c0_26 = arith.constant 0 : index
    %c0_27 = arith.constant 0 : index
    %28 = vector.load %arg12[%c0_26, %c0_27] : memref<1x112xf32, #tpu.memory_space<vmem>>, vector<1x112xf32>
    %29 = vector.broadcast %28 : vector<1x112xf32> to vector<8x112xf32>
    %30 = arith.addf %27, %29 : vector<8x112xf32>
    %31 = arith.negf %30 : vector<8x112xf32>
    %32 = math.exp %31 : vector<8x112xf32>
    %cst_28 = arith.constant 1.000000e+00 : f32
    %33 = vector.broadcast %cst_28 : f32 to vector<8x112xf32>
    %34 = arith.addf %33, %32 : vector<8x112xf32>
    %35 = arith.divf %33, %34 : vector<8x112xf32>
    %c0_29 = arith.constant 0 : index
    %c0_30 = arith.constant 0 : index
    %36 = vector.load %arg13[%c0_29, %c0_30] : memref<32x32xf32, #tpu.memory_space<vmem>>, vector<32x32xf32>
    %cst_31 = arith.constant dense<0.000000e+00> : vector<8x32xf32>
    %37 = tpu.matmul %18, %36, %cst_31 {dimension_numbers = #tpu.dot_dimension_numbers<[1], [0], [0], [1], [0, 0, 1, 1], [], []>} : vector<8x32xf32>, vector<32x32xf32>, vector<8x32xf32> -> vector<8x32xf32>
    %c0_32 = arith.constant 0 : index
    %c0_33 = arith.constant 0 : index
    %38 = vector.load %arg3[%c0_32, %c0_33] : memref<8x32xf32, #tpu.memory_space<vmem>>, vector<8x32xf32>
    %c0_34 = arith.constant 0 : index
    %c0_35 = arith.constant 0 : index
    %39 = vector.load %arg14[%c0_34, %c0_35] : memref<32x32xf32, #tpu.memory_space<vmem>>, vector<32x32xf32>
    %cst_36 = arith.constant dense<0.000000e+00> : vector<8x32xf32>
    %40 = tpu.matmul %38, %39, %cst_36 {dimension_numbers = #tpu.dot_dimension_numbers<[1], [0], [0], [1], [0, 0, 1, 1], [], []>} : vector<8x32xf32>, vector<32x32xf32>, vector<8x32xf32> -> vector<8x32xf32>
    %41 = arith.addf %37, %40 : vector<8x32xf32>
    %c0_37 = arith.constant 0 : index
    %c0_38 = arith.constant 0 : index
    %42 = vector.load %arg15[%c0_37, %c0_38] : memref<1x32xf32, #tpu.memory_space<vmem>>, vector<1x32xf32>
    %43 = vector.broadcast %42 : vector<1x32xf32> to vector<8x32xf32>
    %44 = arith.addf %41, %43 : vector<8x32xf32>
    %cst_39 = arith.constant 0.000000e+00 : f32
    %45 = vector.broadcast %cst_39 : f32 to vector<8x32xf32>
    %46 = arith.maximumf %44, %45 : vector<8x32xf32>
    %c0_40 = arith.constant 0 : index
    %c0_41 = arith.constant 0 : index
    %47 = vector.load %arg16[%c0_40, %c0_41] : memref<32x16xf32, #tpu.memory_space<vmem>>, vector<32x16xf32>
    %cst_42 = arith.constant dense<0.000000e+00> : vector<8x16xf32>
    %48 = tpu.matmul %46, %47, %cst_42 {dimension_numbers = #tpu.dot_dimension_numbers<[1], [0], [0], [1], [0, 0, 1, 1], [], []>} : vector<8x32xf32>, vector<32x16xf32>, vector<8x16xf32> -> vector<8x16xf32>
    %c0_43 = arith.constant 0 : index
    %c0_44 = arith.constant 0 : index
    %49 = vector.load %arg17[%c0_43, %c0_44] : memref<1x16xf32, #tpu.memory_space<vmem>>, vector<1x16xf32>
    %50 = vector.broadcast %49 : vector<1x16xf32> to vector<8x16xf32>
    %51 = arith.addf %48, %50 : vector<8x16xf32>
    %cst_45 = arith.constant 0.000000e+00 : f32
    %52 = vector.broadcast %cst_45 : f32 to vector<8x16xf32>
    %53 = arith.maximumf %51, %52 : vector<8x16xf32>
    %c0_46 = arith.constant 0 : index
    %c0_47 = arith.constant 0 : index
    %54 = vector.load %arg18[%c0_46, %c0_47] : memref<1x16xf32, #tpu.memory_space<vmem>>, vector<1x16xf32>
    %55 = vector.broadcast %54 : vector<1x16xf32> to vector<8x16xf32>
    %56 = arith.mulf %53, %55 : vector<8x16xf32>
    %cst_48 = arith.constant dense<0.000000e+00> : vector<8xf32>
    %57 = vector.multi_reduction <add>, %56, %cst_48 [1] : vector<8x16xf32> to vector<8xf32>
    %58 = vector.shape_cast %57 : vector<8xf32> to vector<8x1xf32>
    %c0_49 = arith.constant 0 : index
    %c0_50 = arith.constant 0 : index
    %59 = vector.load %arg19[%c0_49, %c0_50] : memref<1x1xf32, #tpu.memory_space<vmem>>, vector<1x1xf32>
    %60 = vector.broadcast %59 : vector<1x1xf32> to vector<8x1xf32>
    %61 = arith.addf %58, %60 : vector<8x1xf32>
    %c0_51 = arith.constant 0 : index
    %c0_52 = arith.constant 0 : index
    %62 = vector.load %arg20[%c0_51, %c0_52] : memref<8x256xf32, #tpu.memory_space<vmem>>, vector<8x1xf32>
    tpu.vector_store %arg20[%c0_51, %c0_52], %61 {strides = array<i32>} : memref<8x256xf32, #tpu.memory_space<vmem>>, vector<8x1xf32>,
    %c0_53 = arith.constant 0 : index
    %c128 = arith.constant 128 : index
    %63 = vector.load %arg20[%c0_53, %c128] : memref<8x256xf32, #tpu.memory_space<vmem>>, vector<8x112xf32>
    tpu.vector_store %arg20[%c0_53, %c128], %35 {strides = array<i32>} : memref<8x256xf32, #tpu.memory_space<vmem>>, vector<8x112xf32>,
    return
  }
  func.func @transform_0(%arg0: i32) -> (i32, i32) {
    %c0_i32 = arith.constant 0 : i32
    %c0_i32_0 = arith.constant 0 : i32
    return %arg0, %c0_i32 : i32, i32
  }
  func.func @transform_1(%arg0: i32) -> (i32, i32) {
    %c0_i32 = arith.constant 0 : i32
    %c0_i32_0 = arith.constant 0 : i32
    return %arg0, %c0_i32 : i32, i32
  }
  func.func @transform_2(%arg0: i32) -> (i32, i32) {
    %c0_i32 = arith.constant 0 : i32
    %c0_i32_0 = arith.constant 0 : i32
    return %arg0, %c0_i32 : i32, i32
  }
  func.func @transform_3(%arg0: i32) -> (i32, i32) {
    %c0_i32 = arith.constant 0 : i32
    %c0_i32_0 = arith.constant 0 : i32
    %c0_i32_1 = arith.constant 0 : i32
    return %c0_i32, %c0_i32_0 : i32, i32
  }
  func.func @transform_4(%arg0: i32) -> (i32, i32) {
    %c0_i32 = arith.constant 0 : i32
    %c0_i32_0 = arith.constant 0 : i32
    %c0_i32_1 = arith.constant 0 : i32
    return %c0_i32, %c0_i32_0 : i32, i32
  }
  func.func @transform_5(%arg0: i32) -> (i32, i32) {
    %c0_i32 = arith.constant 0 : i32
    %c0_i32_0 = arith.constant 0 : i32
    %c0_i32_1 = arith.constant 0 : i32
    return %c0_i32, %c0_i32_0 : i32, i32
  }
  func.func @transform_6(%arg0: i32) -> (i32, i32) {
    %c0_i32 = arith.constant 0 : i32
    %c0_i32_0 = arith.constant 0 : i32
    %c0_i32_1 = arith.constant 0 : i32
    return %c0_i32, %c0_i32_0 : i32, i32
  }
  func.func @transform_7(%arg0: i32) -> (i32, i32) {
    %c0_i32 = arith.constant 0 : i32
    %c0_i32_0 = arith.constant 0 : i32
    %c0_i32_1 = arith.constant 0 : i32
    return %c0_i32, %c0_i32_0 : i32, i32
  }
  func.func @transform_8(%arg0: i32) -> (i32, i32) {
    %c0_i32 = arith.constant 0 : i32
    %c0_i32_0 = arith.constant 0 : i32
    %c0_i32_1 = arith.constant 0 : i32
    return %c0_i32, %c0_i32_0 : i32, i32
  }
  func.func @transform_9(%arg0: i32) -> (i32, i32) {
    %c0_i32 = arith.constant 0 : i32
    %c0_i32_0 = arith.constant 0 : i32
    %c0_i32_1 = arith.constant 0 : i32
    return %c0_i32, %c0_i32_0 : i32, i32
  }
  func.func @transform_10(%arg0: i32) -> (i32, i32) {
    %c0_i32 = arith.constant 0 : i32
    %c0_i32_0 = arith.constant 0 : i32
    %c0_i32_1 = arith.constant 0 : i32
    return %c0_i32, %c0_i32_0 : i32, i32
  }
  func.func @transform_11(%arg0: i32) -> (i32, i32) {
    %c0_i32 = arith.constant 0 : i32
    %c0_i32_0 = arith.constant 0 : i32
    %c0_i32_1 = arith.constant 0 : i32
    return %c0_i32, %c0_i32_0 : i32, i32
  }
  func.func @transform_12(%arg0: i32) -> (i32, i32) {
    %c0_i32 = arith.constant 0 : i32
    %c0_i32_0 = arith.constant 0 : i32
    %c0_i32_1 = arith.constant 0 : i32
    return %c0_i32, %c0_i32_0 : i32, i32
  }
  func.func @transform_13(%arg0: i32) -> (i32, i32) {
    %c0_i32 = arith.constant 0 : i32
    %c0_i32_0 = arith.constant 0 : i32
    %c0_i32_1 = arith.constant 0 : i32
    return %c0_i32, %c0_i32_0 : i32, i32
  }
  func.func @transform_14(%arg0: i32) -> (i32, i32) {
    %c0_i32 = arith.constant 0 : i32
    %c0_i32_0 = arith.constant 0 : i32
    %c0_i32_1 = arith.constant 0 : i32
    return %c0_i32, %c0_i32_0 : i32, i32
  }
  func.func @transform_15(%arg0: i32) -> (i32, i32) {
    %c0_i32 = arith.constant 0 : i32
    %c0_i32_0 = arith.constant 0 : i32
    %c0_i32_1 = arith.constant 0 : i32
    return %c0_i32, %c0_i32_0 : i32, i32
  }
  func.func @transform_16(%arg0: i32) -> (i32, i32) {
    %c0_i32 = arith.constant 0 : i32
    %c0_i32_0 = arith.constant 0 : i32
    %c0_i32_1 = arith.constant 0 : i32
    return %c0_i32, %c0_i32_0 : i32, i32
  }
  func.func @transform_17(%arg0: i32) -> (i32, i32) {
    %c0_i32 = arith.constant 0 : i32
    %c0_i32_0 = arith.constant 0 : i32
    %c0_i32_1 = arith.constant 0 : i32
    return %c0_i32, %c0_i32_0 : i32, i32
  }
  func.func @transform_18(%arg0: i32) -> (i32, i32) {
    %c0_i32 = arith.constant 0 : i32
    %c0_i32_0 = arith.constant 0 : i32
    %c0_i32_1 = arith.constant 0 : i32
    return %c0_i32, %c0_i32_0 : i32, i32
  }
  func.func @transform_19(%arg0: i32) -> (i32, i32) {
    %c0_i32 = arith.constant 0 : i32
    %c0_i32_0 = arith.constant 0 : i32
    return %arg0, %c0_i32 : i32, i32
  }
}

</mosaic_0001>

<llo_original>
// kernel: deers_concat_forward.1
$region0: #{deers_concat_forward.1}
  #allocation0 [shape = 'u32[]', space=smem, size = 0x4, offset = 0x4, fixed_abs, tag = 'smem constant byte address 0x4 - core index']
  #allocation1 [shape = 'u32[144,128]{1,0:T(1,128)}', space=vmem, size = 0x12000, scoped, tag = 'internal scratch']
  #allocation2 [shape = 'f32[1,1]{1,0:T(1,128)S(1)}', space=vmem, size = 0x200, scoped, tag = 'scoped memory for deers_concat_forward.1']
  %s0 = inlined_call_operand.vmem [shape: f32[8,64], index: 0, kind: input, shape index: {}]
  %s1 = inlined_call_operand.vmem [shape: f32[8,48], index: 1, kind: input, shape index: {}]
  %s2 = inlined_call_operand.vmem [shape: f32[8,32], index: 2, kind: input, shape index: {}]
  %s3 = inlined_call_operand.vmem [shape: f32[64,64], index: 3, kind: input, shape index: {}]
  %s4 = inlined_call_operand.vmem [shape: f32[48,64], index: 4, kind: input, shape index: {}]
  %s5 = inlined_call_operand.vmem [shape: f32[1,64], index: 5, kind: input, shape index: {}]
  %s6 = inlined_call_operand.vmem [shape: f32[64,32], index: 6, kind: input, shape index: {}]
  %s7 = inlined_call_operand.vmem [shape: f32[1,32], index: 7, kind: input, shape index: {}]
  %s8 = inlined_call_operand.vmem [shape: f32[32,64], index: 8, kind: input, shape index: {}]
  %s9 = inlined_call_operand.vmem [shape: f32[1,64], index: 9, kind: input, shape index: {}]
  %s10 = inlined_call_operand.vmem [shape: f32[64,112], index: 10, kind: input, shape index: {}]
  %s11 = inlined_call_operand.vmem [shape: f32[1,112], index: 11, kind: input, shape index: {}]
  %s12 = inlined_call_operand.vmem [shape: f32[32,32], index: 12, kind: input, shape index: {}]
  %s13 = inlined_call_operand.vmem [shape: f32[32,32], index: 13, kind: input, shape index: {}]
  %s14 = inlined_call_operand.vmem [shape: f32[1,32], index: 14, kind: input, shape index: {}]
  %s15 = inlined_call_operand.vmem [shape: f32[32,16], index: 15, kind: input, shape index: {}]
  %s16 = inlined_call_operand.vmem [shape: f32[1,16], index: 16, kind: input, shape index: {}]
  %s17 = inlined_call_operand.vmem [shape: f32[1,16], index: 17, kind: input, shape index: {}]
  %s18 = inlined_call_operand.<no memory space> [shape: f32[1,1], index: 18, kind: input, shape index: {}]
  %s19 = inlined_call_operand.vmem [shape: f32[8,256], index: 19, kind: output, shape index: {}]
  %s20 = sld [smem:[#allocation0]]
  $region86: #{deers_concat_forward.1} parent=0
    _
  %s22 = ssub.s32 1, %s20
  %s23 = scalar_select 0, %s22, %s20
  %v24 = vstv %s18
  %25 = vst [vmem:[#allocation2] sm:$0x1] %v24
  // Predicated region
  $region2: #{deers_concat_forward.1} parent=0 // pred_check
    _
  $region3: #{deers_concat_forward.1} parent=0 // pred_check_branch
    %27 = sbr.rel (0) target = $region5
  $region4: #{deers_concat_forward.1} parent=0 // pred_region
    _
  $region5: #{deers_concat_forward.1} parent=0 // pred_fallthru
    _
  // Predicated region
  $region6: #{deers_concat_forward.1} parent=0 // pred_check
    _
  $region7: #{deers_concat_forward.1} parent=0 // pred_check_branch
    %29 = sbr.rel (0) target = $region9
  $region8: #{deers_concat_forward.1} parent=0 // pred_region
    _
  $region9: #{deers_concat_forward.1} parent=0 // pred_fallthru
    _
  // Predicated region
  $region10: #{deers_concat_forward.1} parent=0 // pred_check
    _
  $region11: #{deers_concat_forward.1} parent=0 // pred_check_branch
    %31 = sbr.rel (0) target = $region13
  $region12: #{deers_concat_forward.1} parent=0 // pred_region
    _
  $region13: #{deers_concat_forward.1} parent=0 // pred_fallthru
    _
  // Predicated region
  $region14: #{deers_concat_forward.1} parent=0 // pred_check
    _
  $region15: #{deers_concat_forward.1} parent=0 // pred_check_branch
    %33 = sbr.rel (0) target = $region17
  $region16: #{deers_concat_forward.1} parent=0 // pred_region
    _
  $region17: #{deers_concat_forward.1} parent=0 // pred_fallthru
    _
  // Predicated region
  $region18: #{deers_concat_forward.1} parent=0 // pred_check
    _
  $region19: #{deers_concat_forward.1} parent=0 // pred_check_branch
    %35 = sbr.rel (0) target = $region21
  $region20: #{deers_concat_forward.1} parent=0 // pred_region
    _
  $region21: #{deers_concat_forward.1} parent=0 // pred_fallthru
    _
  // Predicated region
  $region22: #{deers_concat_forward.1} parent=0 // pred_check
    _
  $region23: #{deers_concat_forward.1} parent=0 // pred_check_branch
    %37 = sbr.rel (0) target = $region25
  $region24: #{deers_concat_forward.1} parent=0 // pred_region
    _
  $region25: #{deers_concat_forward.1} parent=0 // pred_fallthru
    _
  // Predicated region
  $region26: #{deers_concat_forward.1} parent=0 // pred_check
    _
  $region27: #{deers_concat_forward.1} parent=0 // pred_check_branch
    %39 = sbr.rel (0) target = $region29
  $region28: #{deers_concat_forward.1} parent=0 // pred_region
    _
  $region29: #{deers_concat_forward.1} parent=0 // pred_fallthru
    _
  // Predicated region
  $region30: #{deers_concat_forward.1} parent=0 // pred_check
    _
  $region31: #{deers_concat_forward.1} parent=0 // pred_check_branch
    %41 = sbr.rel (0) target = $region33
  $region32: #{deers_concat_forward.1} parent=0 // pred_region
    _
  $region33: #{deers_concat_forward.1} parent=0 // pred_fallthru
    _
  // Predicated region
  $region34: #{deers_concat_forward.1} parent=0 // pred_check
    _
  $region35: #{deers_concat_forward.1} parent=0 // pred_check_branch
    %43 = sbr.rel (0) target = $region37
  $region36: #{deers_concat_forward.1} parent=0 // pred_region
    _
  $region37: #{deers_concat_forward.1} parent=0 // pred_fallthru
    _
  // Predicated region
  $region38: #{deers_concat_forward.1} parent=0 // pred_check
    _
  $region39: #{deers_concat_forward.1} parent=0 // pred_check_branch
    %45 = sbr.rel (0) target = $region41
  $region40: #{deers_concat_forward.1} parent=0 // pred_region
    _
  $region41: #{deers_concat_forward.1} parent=0 // pred_fallthru
    _
  // Predicated region
  $region42: #{deers_concat_forward.1} parent=0 // pred_check
    _
  $region43: #{deers_concat_forward.1} parent=0 // pred_check_branch
    %47 = sbr.rel (0) target = $region45
  $region44: #{deers_concat_forward.1} parent=0 // pred_region
    _
  $region45: #{deers_concat_forward.1} parent=0 // pred_fallthru
    _
  // Predicated region
  $region46: #{deers_concat_forward.1} parent=0 // pred_check
    _
  $region47: #{deers_concat_forward.1} parent=0 // pred_check_branch
    %49 = sbr.rel (0) target = $region49
  $region48: #{deers_concat_forward.1} parent=0 // pred_region
    _
  $region49: #{deers_concat_forward.1} parent=0 // pred_fallthru
    _
  // Predicated region
  $region50: #{deers_concat_forward.1} parent=0 // pred_check
    _
  $region51: #{deers_concat_forward.1} parent=0 // pred_check_branch
    %51 = sbr.rel (0) target = $region53
  $region52: #{deers_concat_forward.1} parent=0 // pred_region
    _
  $region53: #{deers_concat_forward.1} parent=0 // pred_fallthru
    _
  // Predicated region
  $region54: #{deers_concat_forward.1} parent=0 // pred_check
    _
  $region55: #{deers_concat_forward.1} parent=0 // pred_check_branch
    %53 = sbr.rel (0) target = $region57
  $region56: #{deers_concat_forward.1} parent=0 // pred_region
    _
  $region57: #{deers_concat_forward.1} parent=0 // pred_fallthru
    _
  // Predicated region
  $region58: #{deers_concat_forward.1} parent=0 // pred_check
    _
  $region59: #{deers_concat_forward.1} parent=0 // pred_check_branch
    %55 = sbr.rel (0) target = $region61
  $region60: #{deers_concat_forward.1} parent=0 // pred_region
    _
  $region61: #{deers_concat_forward.1} parent=0 // pred_fallthru
    _
  // Predicated region
  $region62: #{deers_concat_forward.1} parent=0 // pred_check
    _
  $region63: #{deers_concat_forward.1} parent=0 // pred_check_branch
    %57 = sbr.rel (0) target = $region65
  $region64: #{deers_concat_forward.1} parent=0 // pred_region
    _
  $region65: #{deers_concat_forward.1} parent=0 // pred_fallthru
    _
  // Predicated region
  $region66: #{deers_concat_forward.1} parent=0 // pred_check
    _
  $region67: #{deers_concat_forward.1} parent=0 // pred_check_branch
    %59 = sbr.rel (0) target = $region69
  $region68: #{deers_concat_forward.1} parent=0 // pred_region
    _
  $region69: #{deers_concat_forward.1} parent=0 // pred_fallthru
    _
  // Predicated region
  $region70: #{deers_concat_forward.1} parent=0 // pred_check
    _
  $region71: #{deers_concat_forward.1} parent=0 // pred_check_branch
    %61 = sbr.rel (0) target = $region73
  $region72: #{deers_concat_forward.1} parent=0 // pred_region
    _
  $region73: #{deers_concat_forward.1} parent=0 // pred_fallthru
    _
  // Predicated region
  $region74: #{deers_concat_forward.1} parent=0 // pred_check
    _
  $region75: #{deers_concat_forward.1} parent=0 // pred_check_branch
    %63 = sbr.rel (0) target = $region77
  $region76: #{deers_concat_forward.1} parent=0 // pred_region
    _
  $region77: #{deers_concat_forward.1} parent=0 // pred_fallthru
    _
  %v64 = vld [vmem:[%s0] sm:$0xff]
  %v65 = vld [vmem:[%s3] sm:$0xff]
  %v66 = vld [vmem:[%s3 + $0x8] sm:$0xff]
  %v67 = vld [vmem:[%s3 + $0x10] sm:$0xff]
  %v68 = vld [vmem:[%s3 + $0x18] sm:$0xff]
  %v69 = vld [vmem:[%s3 + $0x20] sm:$0xff]
  %v70 = vld [vmem:[%s3 + $0x28] sm:$0xff]
  %v71 = vld [vmem:[%s3 + $0x30] sm:$0xff]
  %v72 = vld [vmem:[%s3 + $0x38] sm:$0xff]
  %v73 = vld [vmem:[%s1] sm:$0xff]
  %v74 = vld [vmem:[%s4] sm:$0xff]
  %v75 = vld [vmem:[%s4 + $0x8] sm:$0xff]
  %v76 = vld [vmem:[%s4 + $0x10] sm:$0xff]
  %v77 = vld [vmem:[%s4 + $0x18] sm:$0xff]
  %v78 = vld [vmem:[%s4 + $0x20] sm:$0xff]
  %v79 = vld [vmem:[%s4 + $0x28] sm:$0xff]
  %vm80 = vcmask 392192
  %v82 = vsel %vm80, %v73, 0
  %84 = vmatprep.subr.mxu0 0.0
  %85 = vmatpush1.msra.mxu0 0.0
  %86 = vmatprep.subr.mxu0 0.0
  %87 = vmatpush1.msra.mxu0 0.0
  %88 = vmatprep.subr.mxu0 0.0
  %89 = vmatpush1.msra.mxu0 0.0
  %90 = vmatprep.subr.mxu0 0.0
  %91 = vmatpush1.msra.mxu0 0.0
  %92 = vmatprep.subr.mxu0 0.0
  %93 = vmatpush1.msra.mxu0 0.0
  %94 = vmatprep.subr.mxu0 0.0
  %95 = vmatpush1.msra.mxu0 0.0
  %96 = vmatprep.subr.mxu0 0.0
  %97 = vmatpush1.msra.mxu0 0.0
  %98 = vmatprep.subr.mxu0 0.0
  %99 = vmatpush1.msra.mxu0 0.0
  %100 = vmatprep.subr.mxu0 0.0
  %101 = vmatpush1.msra.mxu0 0.0
  %102 = vmatprep.subr.mxu0 0.0
  %103 = vmatpush1.msra.mxu0 0.0
  %104 = vmatprep.subr.mxu0 0.0
  %105 = vmatpush1.msra.mxu0 %v79
  %106 = vmatprep.subr.mxu0 0.0
  %107 = vmatpush1.msra.mxu0 %v78
  %108 = vmatprep.subr.mxu0 0.0
  %109 = vmatpush1.msra.mxu0 %v77
  %110 = vmatprep.subr.mxu0 0.0
  %111 = vmatpush1.msra.mxu0 %v76
  %112 = vmatprep.subr.mxu0 0.0
  %113 = vmatpush1.msra.mxu0 %v75
  %114 = vmatprep.subr.mxu0 0.0
  %115 = vmatpush1.msra.mxu0 %v74
  %116 = vmatprep.subr.mxu0 0.0
  %117 = vmatpush2.msra.mxu0 0.0
  %118 = vmatprep.subr.mxu0 0.0
  %119 = vmatpush2.msra.mxu0 0.0
  %120 = vmatprep.subr.mxu0 0.0
  %121 = vmatpush2.msra.mxu0 0.0
  %122 = vmatprep.subr.mxu0 0.0
  %123 = vmatpush2.msra.mxu0 0.0
  %124 = vmatprep.subr.mxu0 0.0
  %125 = vmatpush2.msra.mxu0 0.0
  %126 = vmatprep.subr.mxu0 0.0
  %127 = vmatpush2.msra.mxu0 0.0
  %128 = vmatprep.subr.mxu0 0.0
  %129 = vmatpush2.msra.mxu0 0.0
  %130 = vmatprep.subr.mxu0 0.0
  %131 = vmatpush2.msra.mxu0 0.0
  %132 = vmatprep.subr.mxu0 0.0
  %133 = vmatpush2.msra.mxu0 0.0
  %134 = vmatprep.subr.mxu0 0.0
  %135 = vmatpush2.msra.mxu0 0.0
  %136 = vmatprep.subr.mxu0 0.0
  %137 = vmatpush2.msra.mxu0 0.0
  %138 = vmatprep.subr.mxu0 0.0
  %139 = vmatpush2.msra.mxu0 0.0
  %140 = vmatprep.subr.mxu0 0.0
  %141 = vmatpush2.msra.mxu0 0.0
  %142 = vmatprep.subr.mxu0 0.0
  %143 = vmatpush2.msra.mxu0 0.0
  %144 = vmatprep.subr.mxu0 0.0
  %145 = vmatpush2.msra.mxu0 0.0
  %146 = vmatprep.subr.mxu0 0.0
  %147 = vmatpush2.msra.mxu0 0.0
  %148 = vmatprep.mubr.f32.mxu0 0.0
  %149 = vmatmul.mubr.f32.gmra.mxu0 %v82
  %v150 = vpop.f32.mrf.mxu0
  %v151 = vadd.f32 0.0, %v150
  %v152 = vpop.f32.mrf.mxu0
  %153 = vdwg.mxu0
  %vm154 = vcmask 523264
  %v156 = vsel %vm154, %v64, 0
  %158 = vmatprep.subr.mxu0 0.0
  %159 = vmatpush1.msra.mxu0 0.0
  %160 = vmatprep.subr.mxu0 0.0
  %161 = vmatpush1.msra.mxu0 0.0
  %162 = vmatprep.subr.mxu0 0.0
  %163 = vmatpush1.msra.mxu0 0.0
  %164 = vmatprep.subr.mxu0 0.0
  %165 = vmatpush1.msra.mxu0 0.0
  %166 = vmatprep.subr.mxu0 0.0
  %167 = vmatpush1.msra.mxu0 0.0
  %168 = vmatprep.subr.mxu0 0.0
  %169 = vmatpush1.msra.mxu0 0.0
  %170 = vmatprep.subr.mxu0 0.0
  %171 = vmatpush1.msra.mxu0 0.0
  %172 = vmatprep.subr.mxu0 0.0
  %173 = vmatpush1.msra.mxu0 0.0
  %174 = vmatprep.subr.mxu0 0.0
  %175 = vmatpush1.msra.mxu0 %v72
  %176 = vmatprep.subr.mxu0 0.0
  %177 = vmatpush1.msra.mxu0 %v71
  %178 = vmatprep.subr.mxu0 0.0
  %179 = vmatpush1.msra.mxu0 %v70
  %180 = vmatprep.subr.mxu0 0.0
  %181 = vmatpush1.msra.mxu0 %v69
  %182 = vmatprep.subr.mxu0 0.0
  %183 = vmatpush1.msra.mxu0 %v68
  %184 = vmatprep.subr.mxu0 0.0
  %185 = vmatpush1.msra.mxu0 %v67
  %186 = vmatprep.subr.mxu0 0.0
  %187 = vmatpush1.msra.mxu0 %v66
  %188 = vmatprep.subr.mxu0 0.0
  %189 = vmatpush1.msra.mxu0 %v65
  %190 = vmatprep.subr.mxu0 0.0
  %191 = vmatpush2.msra.mxu0 0.0
  %192 = vmatprep.subr.mxu0 0.0
  %193 = vmatpush2.msra.mxu0 0.0
  %194 = vmatprep.subr.mxu0 0.0
  %195 = vmatpush2.msra.mxu0 0.0
  %196 = vmatprep.subr.mxu0 0.0
  %197 = vmatpush2.msra.mxu0 0.0
  %198 = vmatprep.subr.mxu0 0.0
  %199 = vmatpush2.msra.mxu0 0.0
  %200 = vmatprep.subr.mxu0 0.0
  %201 = vmatpush2.msra.mxu0 0.0
  %202 = vmatprep.subr.mxu0 0.0
  %203 = vmatpush2.msra.mxu0 0.0
  %204 = vmatprep.subr.mxu0 0.0
  %205 = vmatpush2.msra.mxu0 0.0
  %206 = vmatprep.subr.mxu0 0.0
  %207 = vmatpush2.msra.mxu0 0.0
  %208 = vmatprep.subr.mxu0 0.0
  %209 = vmatpush2.msra.mxu0 0.0
  %210 = vmatprep.subr.mxu0 0.0
  %211 = vmatpush2.msra.mxu0 0.0
  %212 = vmatprep.subr.mxu0 0.0
  %213 = vmatpush2.msra.mxu0 0.0
  %214 = vmatprep.subr.mxu0 0.0
  %215 = vmatpush2.msra.mxu0 0.0
  %216 = vmatprep.subr.mxu0 0.0
  %217 = vmatpush2.msra.mxu0 0.0
  %218 = vmatprep.subr.mxu0 0.0
  %219 = vmatpush2.msra.mxu0 0.0
  %220 = vmatprep.subr.mxu0 0.0
  %221 = vmatpush2.msra.mxu0 0.0
  %222 = vmatprep.mubr.f32.mxu0 0.0
  %223 = vmatmul.mubr.f32.gmra.mxu0 %v156
  %v224 = vpop.f32.mrf.mxu0
  %v225 = vadd.f32 %v151, %v224
  %v226 = vpop.f32.mrf.mxu0
  %227 = vdwg.mxu0
  %v228 = vld [vmem:[%s5] sm:$0x1]
  %v230 = vlaneseq
  %v231 = vshrl.u32 %v230, 7
  %v232 = vsub.s32 0, %v231
  %v233 = vrot.slane %v228, %v232
  %v235 = vadd.f32 %v225, %v233
  %v236 = vmax.f32 %v235, 0.0
  %v237 = vld [vmem:[%s6] sm:$0xff]
  %v238 = vld [vmem:[%s6 + $0x8] sm:$0xff]
  %v239 = vld [vmem:[%s6 + $0x10] sm:$0xff]
  %v240 = vld [vmem:[%s6 + $0x18] sm:$0xff]
  %v241 = vld [vmem:[%s6 + $0x20] sm:$0xff]
  %v242 = vld [vmem:[%s6 + $0x28] sm:$0xff]
  %v243 = vld [vmem:[%s6 + $0x30] sm:$0xff]
  %v244 = vld [vmem:[%s6 + $0x38] sm:$0xff]
  %v245 = vld [vmem:[%s7] sm:$0x1]
  %v247 = vlaneseq
  %v248 = vshrl.u32 %v247, 7
  %v249 = vsub.s32 0, %v248
  %v250 = vrot.slane %v245, %v249
  %v253 = vsel %vm154, %v236, 0
  %255 = vmatprep.subr.mxu0 0.0
  %256 = vmatpush1.msra.mxu0 0.0
  %257 = vmatprep.subr.mxu0 0.0
  %258 = vmatpush1.msra.mxu0 0.0
  %259 = vmatprep.subr.mxu0 0.0
  %260 = vmatpush1.msra.mxu0 0.0
  %261 = vmatprep.subr.mxu0 0.0
  %262 = vmatpush1.msra.mxu0 0.0
  %263 = vmatprep.subr.mxu0 0.0
  %264 = vmatpush1.msra.mxu0 0.0
  %265 = vmatprep.subr.mxu0 0.0
  %266 = vmatpush1.msra.mxu0 0.0
  %267 = vmatprep.subr.mxu0 0.0
  %268 = vmatpush1.msra.mxu0 0.0
  %269 = vmatprep.subr.mxu0 0.0
  %270 = vmatpush1.msra.mxu0 0.0
  %271 = vmatprep.subr.mxu0 0.0
  %272 = vmatpush1.msra.mxu0 %v244
  %273 = vmatprep.subr.mxu0 0.0
  %274 = vmatpush1.msra.mxu0 %v243
  %275 = vmatprep.subr.mxu0 0.0
  %276 = vmatpush1.msra.mxu0 %v242
  %277 = vmatprep.subr.mxu0 0.0
  %278 = vmatpush1.msra.mxu0 %v241
  %279 = vmatprep.subr.mxu0 0.0
  %280 = vmatpush1.msra.mxu0 %v240
  %281 = vmatprep.subr.mxu0 0.0
  %282 = vmatpush1.msra.mxu0 %v239
  %283 = vmatprep.subr.mxu0 0.0
  %284 = vmatpush1.msra.mxu0 %v238
  %285 = vmatprep.subr.mxu0 0.0
  %286 = vmatpush1.msra.mxu0 %v237
  %287 = vmatprep.subr.mxu0 0.0
  %288 = vmatpush2.msra.mxu0 0.0
  %289 = vmatprep.subr.mxu0 0.0
  %290 = vmatpush2.msra.mxu0 0.0
  %291 = vmatprep.subr.mxu0 0.0
  %292 = vmatpush2.msra.mxu0 0.0
  %293 = vmatprep.subr.mxu0 0.0
  %294 = vmatpush2.msra.mxu0 0.0
  %295 = vmatprep.subr.mxu0 0.0
  %296 = vmatpush2.msra.mxu0 0.0
  %297 = vmatprep.subr.mxu0 0.0
  %298 = vmatpush2.msra.mxu0 0.0
  %299 = vmatprep.subr.mxu0 0.0
  %300 = vmatpush2.msra.mxu0 0.0
  %301 = vmatprep.subr.mxu0 0.0
  %302 = vmatpush2.msra.mxu0 0.0
  %303 = vmatprep.subr.mxu0 0.0
  %304 = vmatpush2.msra.mxu0 0.0
  %305 = vmatprep.subr.mxu0 0.0
  %306 = vmatpush2.msra.mxu0 0.0
  %307 = vmatprep.subr.mxu0 0.0
  %308 = vmatpush2.msra.mxu0 0.0
  %309 = vmatprep.subr.mxu0 0.0
  %310 = vmatpush2.msra.mxu0 0.0
  %311 = vmatprep.subr.mxu0 0.0
  %312 = vmatpush2.msra.mxu0 0.0
  %313 = vmatprep.subr.mxu0 0.0
  %314 = vmatpush2.msra.mxu0 0.0
  %315 = vmatprep.subr.mxu0 0.0
  %316 = vmatpush2.msra.mxu0 0.0
  %317 = vmatprep.subr.mxu0 0.0
  %318 = vmatpush2.msra.mxu0 0.0
  %319 = vmatprep.mubr.f32.mxu0 0.0
  %320 = vmatmul.mubr.f32.gmra.mxu0 %v253
  %v321 = vpop.f32.mrf.mxu0
  %v322 = vadd.f32 %v250, %v321
  %v323 = vpop.f32.mrf.mxu0
  %324 = vdwg.mxu0
  %v325 = vmax.f32 %v322, 0.0
  %v326 = vld [vmem:[%s8] sm:$0xff]
  %v327 = vld [vmem:[%s8 + $0x8] sm:$0xff]
  %v328 = vld [vmem:[%s8 + $0x10] sm:$0xff]
  %v329 = vld [vmem:[%s8 + $0x18] sm:$0xff]
  %v330 = vld [vmem:[%s9] sm:$0x1]
  %v332 = vlaneseq
  %v333 = vshrl.u32 %v332, 7
  %v334 = vsub.s32 0, %v333
  %v335 = vrot.slane %v330, %v334
  %vm337 = vcmask 261120
  %v339 = vsel %vm337, %v325, 0
  %341 = vmatprep.subr.mxu0 0.0
  %342 = vmatpush1.msra.mxu0 0.0
  %343 = vmatprep.subr.mxu0 0.0
  %344 = vmatpush1.msra.mxu0 0.0
  %345 = vmatprep.subr.mxu0 0.0
  %346 = vmatpush1.msra.mxu0 0.0
  %347 = vmatprep.subr.mxu0 0.0
  %348 = vmatpush1.msra.mxu0 0.0
  %349 = vmatprep.subr.mxu0 0.0
  %350 = vmatpush1.msra.mxu0 0.0
  %351 = vmatprep.subr.mxu0 0.0
  %352 = vmatpush1.msra.mxu0 0.0
  %353 = vmatprep.subr.mxu0 0.0
  %354 = vmatpush1.msra.mxu0 0.0
  %355 = vmatprep.subr.mxu0 0.0
  %356 = vmatpush1.msra.mxu0 0.0
  %357 = vmatprep.subr.mxu0 0.0
  %358 = vmatpush1.msra.mxu0 0.0
  %359 = vmatprep.subr.mxu0 0.0
  %360 = vmatpush1.msra.mxu0 0.0
  %361 = vmatprep.subr.mxu0 0.0
  %362 = vmatpush1.msra.mxu0 0.0
  %363 = vmatprep.subr.mxu0 0.0
  %364 = vmatpush1.msra.mxu0 0.0
  %365 = vmatprep.subr.mxu0 0.0
  %366 = vmatpush1.msra.mxu0 %v329
  %367 = vmatprep.subr.mxu0 0.0
  %368 = vmatpush1.msra.mxu0 %v328
  %369 = vmatprep.subr.mxu0 0.0
  %370 = vmatpush1.msra.mxu0 %v327
  %371 = vmatprep.subr.mxu0 0.0
  %372 = vmatpush1.msra.mxu0 %v326
  %373 = vmatprep.subr.mxu0 0.0
  %374 = vmatpush2.msra.mxu0 0.0
  %375 = vmatprep.subr.mxu0 0.0
  %376 = vmatpush2.msra.mxu0 0.0
  %377 = vmatprep.subr.mxu0 0.0
  %378 = vmatpush2.msra.mxu0 0.0
  %379 = vmatprep.subr.mxu0 0.0
  %380 = vmatpush2.msra.mxu0 0.0
  %381 = vmatprep.subr.mxu0 0.0
  %382 = vmatpush2.msra.mxu0 0.0
  %383 = vmatprep.subr.mxu0 0.0
  %384 = vmatpush2.msra.mxu0 0.0
  %385 = vmatprep.subr.mxu0 0.0
  %386 = vmatpush2.msra.mxu0 0.0
  %387 = vmatprep.subr.mxu0 0.0
  %388 = vmatpush2.msra.mxu0 0.0
  %389 = vmatprep.subr.mxu0 0.0
  %390 = vmatpush2.msra.mxu0 0.0
  %391 = vmatprep.subr.mxu0 0.0
  %392 = vmatpush2.msra.mxu0 0.0
  %393 = vmatprep.subr.mxu0 0.0
  %394 = vmatpush2.msra.mxu0 0.0
  %395 = vmatprep.subr.mxu0 0.0
  %396 = vmatpush2.msra.mxu0 0.0
  %397 = vmatprep.subr.mxu0 0.0
  %398 = vmatpush2.msra.mxu0 0.0
  %399 = vmatprep.subr.mxu0 0.0
  %400 = vmatpush2.msra.mxu0 0.0
  %401 = vmatprep.subr.mxu0 0.0
  %402 = vmatpush2.msra.mxu0 0.0
  %403 = vmatprep.subr.mxu0 0.0
  %404 = vmatpush2.msra.mxu0 0.0
  %405 = vmatprep.mubr.f32.mxu0 0.0
  %406 = vmatmul.mubr.f32.gmra.mxu0 %v339
  %v407 = vpop.f32.mrf.mxu0
  %v408 = vadd.f32 %v335, %v407
  %v409 = vpop.f32.mrf.mxu0
  %410 = vdwg.mxu0
  %v411 = vmax.f32 %v408, 0.0
  %v412 = vld [vmem:[%s10] sm:$0xff]
  %v413 = vld [vmem:[%s10 + $0x8] sm:$0xff]
  %v414 = vld [vmem:[%s10 + $0x10] sm:$0xff]
  %v415 = vld [vmem:[%s10 + $0x18] sm:$0xff]
  %v416 = vld [vmem:[%s10 + $0x20] sm:$0xff]
  %v417 = vld [vmem:[%s10 + $0x28] sm:$0xff]
  %v418 = vld [vmem:[%s10 + $0x30] sm:$0xff]
  %v419 = vld [vmem:[%s10 + $0x38] sm:$0xff]
  %v420 = vld [vmem:[%s11] sm:$0x1]
  %v422 = vlaneseq
  %v423 = vshrl.u32 %v422, 7
  %v424 = vsub.s32 0, %v423
  %v425 = vrot.slane %v420, %v424
  %v428 = vsel %vm154, %v411, 0
  %430 = vmatprep.subr.mxu0 0.0
  %431 = vmatpush1.msra.mxu0 0.0
  %432 = vmatprep.subr.mxu0 0.0
  %433 = vmatpush1.msra.mxu0 0.0
  %434 = vmatprep.subr.mxu0 0.0
  %435 = vmatpush1.msra.mxu0 0.0
  %436 = vmatprep.subr.mxu0 0.0
  %437 = vmatpush1.msra.mxu0 0.0
  %438 = vmatprep.subr.mxu0 0.0
  %439 = vmatpush1.msra.mxu0 0.0
  %440 = vmatprep.subr.mxu0 0.0
  %441 = vmatpush1.msra.mxu0 0.0
  %442 = vmatprep.subr.mxu0 0.0
  %443 = vmatpush1.msra.mxu0 0.0
  %444 = vmatprep.subr.mxu0 0.0
  %445 = vmatpush1.msra.mxu0 0.0
  %446 = vmatprep.subr.mxu0 0.0
  %447 = vmatpush1.msra.mxu0 %v419
  %448 = vmatprep.subr.mxu0 0.0
  %449 = vmatpush1.msra.mxu0 %v418
  %450 = vmatprep.subr.mxu0 0.0
  %451 = vmatpush1.msra.mxu0 %v417
  %452 = vmatprep.subr.mxu0 0.0
  %453 = vmatpush1.msra.mxu0 %v416
  %454 = vmatprep.subr.mxu0 0.0
  %455 = vmatpush1.msra.mxu0 %v415
  %456 = vmatprep.subr.mxu0 0.0
  %457 = vmatpush1.msra.mxu0 %v414
  %458 = vmatprep.subr.mxu0 0.0
  %459 = vmatpush1.msra.mxu0 %v413
  %460 = vmatprep.subr.mxu0 0.0
  %461 = vmatpush1.msra.mxu0 %v412
  %462 = vmatprep.subr.mxu0 0.0
  %463 = vmatpush2.msra.mxu0 0.0
  %464 = vmatprep.subr.mxu0 0.0
  %465 = vmatpush2.msra.mxu0 0.0
  %466 = vmatprep.subr.mxu0 0.0
  %467 = vmatpush2.msra.mxu0 0.0
  %468 = vmatprep.subr.mxu0 0.0
  %469 = vmatpush2.msra.mxu0 0.0
  %470 = vmatprep.subr.mxu0 0.0
  %471 = vmatpush2.msra.mxu0 0.0
  %472 = vmatprep.subr.mxu0 0.0
  %473 = vmatpush2.msra.mxu0 0.0
  %474 = vmatprep.subr.mxu0 0.0
  %475 = vmatpush2.msra.mxu0 0.0
  %476 = vmatprep.subr.mxu0 0.0
  %477 = vmatpush2.msra.mxu0 0.0
  %478 = vmatprep.subr.mxu0 0.0
  %479 = vmatpush2.msra.mxu0 0.0
  %480 = vmatprep.subr.mxu0 0.0
  %481 = vmatpush2.msra.mxu0 0.0
  %482 = vmatprep.subr.mxu0 0.0
  %483 = vmatpush2.msra.mxu0 0.0
  %484 = vmatprep.subr.mxu0 0.0
  %485 = vmatpush2.msra.mxu0 0.0
  %486 = vmatprep.subr.mxu0 0.0
  %487 = vmatpush2.msra.mxu0 0.0
  %488 = vmatprep.subr.mxu0 0.0
  %489 = vmatpush2.msra.mxu0 0.0
  %490 = vmatprep.subr.mxu0 0.0
  %491 = vmatpush2.msra.mxu0 0.0
  %492 = vmatprep.subr.mxu0 0.0
  %493 = vmatpush2.msra.mxu0 0.0
  %494 = vmatprep.mubr.f32.mxu0 0.0
  %495 = vmatmul.mubr.f32.gmra.mxu0 %v428
  %v496 = vpop.f32.mrf.mxu0
  %v497 = vadd.f32 %v425, %v496
  %v498 = vpop.f32.mrf.mxu0
  %499 = vdwg.mxu0
  %v500 = vxor.u32 %v497, 2147483648
  %v501 = vmul.f32 %v500, 1.442695
  %v502 = vpow.pop %v501
  %v503 = vadd.f32 %v502, 1.0
  %v504 = vrcp.pop %v503
  %v505 = vmul.f32 1.0, %v504
  %v506 = vld [vmem:[%s12] sm:$0xff]
  %v507 = vld [vmem:[%s12 + $0x8] sm:$0xff]
  %v508 = vld [vmem:[%s12 + $0x10] sm:$0xff]
  %v509 = vld [vmem:[%s12 + $0x18] sm:$0xff]
  %v510 = vld [vmem:[%s2] sm:$0xff]
  %v511 = vld [vmem:[%s13] sm:$0xff]
  %v512 = vld [vmem:[%s13 + $0x8] sm:$0xff]
  %v513 = vld [vmem:[%s13 + $0x10] sm:$0xff]
  %v514 = vld [vmem:[%s13 + $0x18] sm:$0xff]
  %v516 = vsel %vm337, %v510, 0
  %518 = vmatprep.subr.mxu0 0.0
  %519 = vmatpush1.msra.mxu0 0.0
  %520 = vmatprep.subr.mxu0 0.0
  %521 = vmatpush1.msra.mxu0 0.0
  %522 = vmatprep.subr.mxu0 0.0
  %523 = vmatpush1.msra.mxu0 0.0
  %524 = vmatprep.subr.mxu0 0.0
  %525 = vmatpush1.msra.mxu0 0.0
  %526 = vmatprep.subr.mxu0 0.0
  %527 = vmatpush1.msra.mxu0 0.0
  %528 = vmatprep.subr.mxu0 0.0
  %529 = vmatpush1.msra.mxu0 0.0
  %530 = vmatprep.subr.mxu0 0.0
  %531 = vmatpush1.msra.mxu0 0.0
  %532 = vmatprep.subr.mxu0 0.0
  %533 = vmatpush1.msra.mxu0 0.0
  %534 = vmatprep.subr.mxu0 0.0
  %535 = vmatpush1.msra.mxu0 0.0
  %536 = vmatprep.subr.mxu0 0.0
  %537 = vmatpush1.msra.mxu0 0.0
  %538 = vmatprep.subr.mxu0 0.0
  %539 = vmatpush1.msra.mxu0 0.0
  %540 = vmatprep.subr.mxu0 0.0
  %541 = vmatpush1.msra.mxu0 0.0
  %542 = vmatprep.subr.mxu0 0.0
  %543 = vmatpush1.msra.mxu0 %v514
  %544 = vmatprep.subr.mxu0 0.0
  %545 = vmatpush1.msra.mxu0 %v513
  %546 = vmatprep.subr.mxu0 0.0
  %547 = vmatpush1.msra.mxu0 %v512
  %548 = vmatprep.subr.mxu0 0.0
  %549 = vmatpush1.msra.mxu0 %v511
  %550 = vmatprep.subr.mxu0 0.0
  %551 = vmatpush2.msra.mxu0 0.0
  %552 = vmatprep.subr.mxu0 0.0
  %553 = vmatpush2.msra.mxu0 0.0
  %554 = vmatprep.subr.mxu0 0.0
  %555 = vmatpush2.msra.mxu0 0.0
  %556 = vmatprep.subr.mxu0 0.0
  %557 = vmatpush2.msra.mxu0 0.0
  %558 = vmatprep.subr.mxu0 0.0
  %559 = vmatpush2.msra.mxu0 0.0
  %560 = vmatprep.subr.mxu0 0.0
  %561 = vmatpush2.msra.mxu0 0.0
  %562 = vmatprep.subr.mxu0 0.0
  %563 = vmatpush2.msra.mxu0 0.0
  %564 = vmatprep.subr.mxu0 0.0
  %565 = vmatpush2.msra.mxu0 0.0
  %566 = vmatprep.subr.mxu0 0.0
  %567 = vmatpush2.msra.mxu0 0.0
  %568 = vmatprep.subr.mxu0 0.0
  %569 = vmatpush2.msra.mxu0 0.0
  %570 = vmatprep.subr.mxu0 0.0
  %571 = vmatpush2.msra.mxu0 0.0
  %572 = vmatprep.subr.mxu0 0.0
  %573 = vmatpush2.msra.mxu0 0.0
  %574 = vmatprep.subr.mxu0 0.0
  %575 = vmatpush2.msra.mxu0 0.0
  %576 = vmatprep.subr.mxu0 0.0
  %577 = vmatpush2.msra.mxu0 0.0
  %578 = vmatprep.subr.mxu0 0.0
  %579 = vmatpush2.msra.mxu0 0.0
  %580 = vmatprep.subr.mxu0 0.0
  %581 = vmatpush2.msra.mxu0 0.0
  %582 = vmatprep.mubr.f32.mxu0 0.0
  %583 = vmatmul.mubr.f32.gmra.mxu0 %v516
  %v584 = vpop.f32.mrf.mxu0
  %v585 = vadd.f32 0.0, %v584
  %v586 = vpop.f32.mrf.mxu0
  %587 = vdwg.mxu0
  %588 = vmatprep.subr.mxu0 0.0
  %589 = vmatpush1.msra.mxu0 0.0
  %590 = vmatprep.subr.mxu0 0.0
  %591 = vmatpush1.msra.mxu0 0.0
  %592 = vmatprep.subr.mxu0 0.0
  %593 = vmatpush1.msra.mxu0 0.0
  %594 = vmatprep.subr.mxu0 0.0
  %595 = vmatpush1.msra.mxu0 0.0
  %596 = vmatprep.subr.mxu0 0.0
  %597 = vmatpush1.msra.mxu0 0.0
  %598 = vmatprep.subr.mxu0 0.0
  %599 = vmatpush1.msra.mxu0 0.0
  %600 = vmatprep.subr.mxu0 0.0
  %601 = vmatpush1.msra.mxu0 0.0
  %602 = vmatprep.subr.mxu0 0.0
  %603 = vmatpush1.msra.mxu0 0.0
  %604 = vmatprep.subr.mxu0 0.0
  %605 = vmatpush1.msra.mxu0 0.0
  %606 = vmatprep.subr.mxu0 0.0
  %607 = vmatpush1.msra.mxu0 0.0
  %608 = vmatprep.subr.mxu0 0.0
  %609 = vmatpush1.msra.mxu0 0.0
  %610 = vmatprep.subr.mxu0 0.0
  %611 = vmatpush1.msra.mxu0 0.0
  %612 = vmatprep.subr.mxu0 0.0
  %613 = vmatpush1.msra.mxu0 %v509
  %614 = vmatprep.subr.mxu0 0.0
  %615 = vmatpush1.msra.mxu0 %v508
  %616 = vmatprep.subr.mxu0 0.0
  %617 = vmatpush1.msra.mxu0 %v507
  %618 = vmatprep.subr.mxu0 0.0
  %619 = vmatpush1.msra.mxu0 %v506
  %620 = vmatprep.subr.mxu0 0.0
  %621 = vmatpush2.msra.mxu0 0.0
  %622 = vmatprep.subr.mxu0 0.0
  %623 = vmatpush2.msra.mxu0 0.0
  %624 = vmatprep.subr.mxu0 0.0
  %625 = vmatpush2.msra.mxu0 0.0
  %626 = vmatprep.subr.mxu0 0.0
  %627 = vmatpush2.msra.mxu0 0.0
  %628 = vmatprep.subr.mxu0 0.0
  %629 = vmatpush2.msra.mxu0 0.0
  %630 = vmatprep.subr.mxu0 0.0
  %631 = vmatpush2.msra.mxu0 0.0
  %632 = vmatprep.subr.mxu0 0.0
  %633 = vmatpush2.msra.mxu0 0.0
  %634 = vmatprep.subr.mxu0 0.0
  %635 = vmatpush2.msra.mxu0 0.0
  %636 = vmatprep.subr.mxu0 0.0
  %637 = vmatpush2.msra.mxu0 0.0
  %638 = vmatprep.subr.mxu0 0.0
  %639 = vmatpush2.msra.mxu0 0.0
  %640 = vmatprep.subr.mxu0 0.0
  %641 = vmatpush2.msra.mxu0 0.0
  %642 = vmatprep.subr.mxu0 0.0
  %643 = vmatpush2.msra.mxu0 0.0
  %644 = vmatprep.subr.mxu0 0.0
  %645 = vmatpush2.msra.mxu0 0.0
  %646 = vmatprep.subr.mxu0 0.0
  %647 = vmatpush2.msra.mxu0 0.0
  %648 = vmatprep.subr.mxu0 0.0
  %649 = vmatpush2.msra.mxu0 0.0
  %650 = vmatprep.subr.mxu0 0.0
  %651 = vmatpush2.msra.mxu0 0.0
  %652 = vmatprep.mubr.f32.mxu0 0.0
  %653 = vmatmul.mubr.f32.gmra.mxu0 %v339
  %v654 = vpop.f32.mrf.mxu0
  %v655 = vadd.f32 %v585, %v654
  %v656 = vpop.f32.mrf.mxu0
  %657 = vdwg.mxu0
  %v658 = vld [vmem:[%s14] sm:$0x1]
  %v660 = vlaneseq
  %v661 = vshrl.u32 %v660, 7
  %v662 = vsub.s32 0, %v661
  %v663 = vrot.slane %v658, %v662
  %v665 = vadd.f32 %v655, %v663
  %v666 = vmax.f32 %v665, 0.0
  %v667 = vld [vmem:[%s15] sm:$0xff]
  %v668 = vld [vmem:[%s15 + $0x8] sm:$0xff]
  %v669 = vld [vmem:[%s15 + $0x10] sm:$0xff]
  %v670 = vld [vmem:[%s15 + $0x18] sm:$0xff]
  %v671 = vld [vmem:[%s16] sm:$0x1]
  %v673 = vlaneseq
  %v674 = vshrl.u32 %v673, 7
  %v675 = vsub.s32 0, %v674
  %v676 = vrot.slane %v671, %v675
  %v679 = vsel %vm337, %v666, 0
  %681 = vmatprep.subr.mxu0 0.0
  %682 = vmatpush1.msra.mxu0 0.0
  %683 = vmatprep.subr.mxu0 0.0
  %684 = vmatpush1.msra.mxu0 0.0
  %685 = vmatprep.subr.mxu0 0.0
  %686 = vmatpush1.msra.mxu0 0.0
  %687 = vmatprep.subr.mxu0 0.0
  %688 = vmatpush1.msra.mxu0 0.0
  %689 = vmatprep.subr.mxu0 0.0
  %690 = vmatpush1.msra.mxu0 0.0
  %691 = vmatprep.subr.mxu0 0.0
  %692 = vmatpush1.msra.mxu0 0.0
  %693 = vmatprep.subr.mxu0 0.0
  %694 = vmatpush1.msra.mxu0 0.0
  %695 = vmatprep.subr.mxu0 0.0
  %696 = vmatpush1.msra.mxu0 0.0
  %697 = vmatprep.subr.mxu0 0.0
  %698 = vmatpush1.msra.mxu0 0.0
  %699 = vmatprep.subr.mxu0 0.0
  %700 = vmatpush1.msra.mxu0 0.0
  %701 = vmatprep.subr.mxu0 0.0
  %702 = vmatpush1.msra.mxu0 0.0
  %703 = vmatprep.subr.mxu0 0.0
  %704 = vmatpush1.msra.mxu0 0.0
  %705 = vmatprep.subr.mxu0 0.0
  %706 = vmatpush1.msra.mxu0 %v670
  %707 = vmatprep.subr.mxu0 0.0
  %708 = vmatpush1.msra.mxu0 %v669
  %709 = vmatprep.subr.mxu0 0.0
  %710 = vmatpush1.msra.mxu0 %v668
  %711 = vmatprep.subr.mxu0 0.0
  %712 = vmatpush1.msra.mxu0 %v667
  %713 = vmatprep.subr.mxu0 0.0
  %714 = vmatpush2.msra.mxu0 0.0
  %715 = vmatprep.subr.mxu0 0.0
  %716 = vmatpush2.msra.mxu0 0.0
  %717 = vmatprep.subr.mxu0 0.0
  %718 = vmatpush2.msra.mxu0 0.0
  %719 = vmatprep.subr.mxu0 0.0
  %720 = vmatpush2.msra.mxu0 0.0
  %721 = vmatprep.subr.mxu0 0.0
  %722 = vmatpush2.msra.mxu0 0.0
  %723 = vmatprep.subr.mxu0 0.0
  %724 = vmatpush2.msra.mxu0 0.0
  %725 = vmatprep.subr.mxu0 0.0
  %726 = vmatpush2.msra.mxu0 0.0
  %727 = vmatprep.subr.mxu0 0.0
  %728 = vmatpush2.msra.mxu0 0.0
  %729 = vmatprep.subr.mxu0 0.0
  %730 = vmatpush2.msra.mxu0 0.0
  %731 = vmatprep.subr.mxu0 0.0
  %732 = vmatpush2.msra.mxu0 0.0
  %733 = vmatprep.subr.mxu0 0.0
  %734 = vmatpush2.msra.mxu0 0.0
  %735 = vmatprep.subr.mxu0 0.0
  %736 = vmatpush2.msra.mxu0 0.0
  %737 = vmatprep.subr.mxu0 0.0
  %738 = vmatpush2.msra.mxu0 0.0
  %739 = vmatprep.subr.mxu0 0.0
  %740 = vmatpush2.msra.mxu0 0.0
  %741 = vmatprep.subr.mxu0 0.0
  %742 = vmatpush2.msra.mxu0 0.0
  %743 = vmatprep.subr.mxu0 0.0
  %744 = vmatpush2.msra.mxu0 0.0
  %745 = vmatprep.mubr.f32.mxu0 0.0
  %746 = vmatmul.mubr.f32.gmra.mxu0 %v679
  %v747 = vpop.f32.mrf.mxu0
  %v748 = vadd.f32 %v676, %v747
  %v749 = vpop.f32.mrf.mxu0
  %750 = vdwg.mxu0
  %v751 = vmax.f32 %v748, 0.0
  %v752 = vld [vmem:[%s17] sm:$0x1]
  %v754 = vlaneseq
  %v755 = vshrl.u32 %v754, 7
  %v756 = vsub.s32 0, %v755
  %v757 = vrot.slane %v752, %v756
  %v759 = vmul.f32 %v751, %v757
  %vm760 = vcmask 130048
  %v761 = vsel %vm760, %v759, 0.0
  %762 = vadd.xlane.f32.xlu0 %v761
  %v763 = vpop.xlane.xlu0 %762
  %v764 = vld [vmem:[#allocation2] sm:$0x1]
  %v766 = vlaneseq
  %v767 = vshrl.u32 %v766, 7
  %v768 = vsub.s32 0, %v767
  %v769 = vrot.slane %v764, %v768
  %v771 = vadd.f32 %v763, %v769
  %vm772 = vcmask 7168
  %773 = vst.msk [vmem:[%s19] sm:$0xff] %vm772, %v771
  %vm774 = vcmask 916480
  %775 = vst.msk [vmem:[%s19 + $0x8] sm:$0xff] %vm774, %v505
  // Predicated region
  $region78: #{deers_concat_forward.1} parent=0 // pred_check
    _
  $region79: #{deers_concat_forward.1} parent=0 // pred_check_branch
    %777 = sbr.rel (0) target = $region81
  $region80: #{deers_concat_forward.1} parent=0 // pred_region
    _
  $region81: #{deers_concat_forward.1} parent=0 // pred_fallthru
    _
  // Predicated region
  $region82: #{deers_concat_forward.1} parent=0 // pred_check
    _
  $region83: #{deers_concat_forward.1} parent=0 // pred_check_branch
    %779 = sbr.rel (0) target = $region85
  $region84: #{deers_concat_forward.1} parent=0 // pred_region
    _
  $region85: #{deers_concat_forward.1} parent=0 // pred_fallthru
    _

</llo_original>
